<compile_context>
chip_gen: v6e
topology: v6e:2x2x1
jax: 0.10.0
libtpu: 0.0.40
codegen_flags: <defaults>
</compile_context>

<pallas_src>
import numpy as np
import jax
import jax.numpy as jnp
from jax.experimental import pallas as pl
from jax.experimental.pallas import tpu as pltpu

LANE = 128


# --------------- init-time weight preprocessing (host side, run once) --------

def _conv_row_toeplitz(w_oihw, w_img):
    """torch Conv2d weight (Cout, Cin, 3, 3) -> K-packed block-Toeplitz matrix.

    Returns (3*w_img*Cin, w_img*Cout) so that with the activation slab staged as
    rows (n, h) x lanes [x_pad[h] | x_pad[h+1] | x_pad[h+2]] (lane order w*Cin+c
    within each shift), the 'same' 3x3 convolution is a single GEMM y = xs @ T.
    W-direction zero padding is folded into the banded structure.
    """
    w = np.asarray(w_oihw, np.float32)
    cout, cin, kh, kw = w.shape
    t = np.zeros((kh, w_img * cin, w_img * cout), np.float32)
    for di in range(kh):
        for wo in range(w_img):
            for dj in range(kw):
                wi = wo + dj - 1
                if 0 <= wi < w_img:
                    t[di, wi * cin:(wi + 1) * cin,
                      wo * cout:(wo + 1) * cout] = w[:, :, di, dj].T
    return t.reshape(kh * w_img * cin, w_img * cout)


def _pool_w_selectors(w_img, c):
    """Fused 0/1 selector [S_even | S_odd] of shape (w_img*c, w_img*c).

    MaxPool2d(2) along W becomes ONE GEMM followed by a max of the two lane
    halves: max((x @ S)[:, :half], (x @ S)[:, half:]).
    """
    half = (w_img // 2) * c
    s = np.zeros((2, w_img * c, half), np.float32)
    eye = np.eye(c, dtype=np.float32)
    for par in range(2):
        for wo in range(w_img // 2):
            wi = 2 * wo + par
            s[par, wi * c:(wi + 1) * c, wo * c:(wo + 1) * c] = eye
    return np.concatenate([s[0], s[1]], axis=1)


def _fc1_flatten(w_fc, c, h, w):
    """torch Linear weight (out, c*h*w) -> (h*w*c, out).

    Row index = ho*(w*c) + wo*c + cc, matching the in-kernel lane-major packing
    of the pool2 output (folds the NCHW flatten permutation into the weight).
    """
    wm = np.asarray(w_fc, np.float32)
    out = wm.shape[0]
    wm = wm.reshape(out, c, h, w).transpose(2, 3, 1, 0)   # (h, w, c, out)
    return wm.reshape(h * w * c, out)


def _pad_cols(a, width=LANE):
    a = np.asarray(a, np.float32)
    assert a.shape[1] <= width
    out = np.zeros((a.shape[0], width), np.float32)
    out[:, :a.shape[1]] = a
    return out


def _pick_batch_block(n):
    """Largest batch block in {8,4,2,1} that divides n and leaves >= 2 grid steps."""
    for nb in (8, 4, 2, 1):
        if n % nb == 0 and n // nb >= 2:
            return nb
    return n


# ---------------------------- pure-JAX reference -----------------------------

def _reference_forward(m, x):
    """XLA reference of the torch forward (for numerical cross-checking)."""
    def pool(y):
        n, c, h, w = y.shape
        return y.reshape(n, c, h // 2, 2, w // 2, 2).max(axis=(3, 5))
    dn = ("NCHW", "OIHW", "NCHW")
    y = jax.lax.conv_general_dilated(x, m.conv1_w, (1, 1), ((1, 1), (1, 1)),
                                     dimension_numbers=dn)
    y = pool(jnp.maximum(y + m.conv1_b[None, :, None, None], 0.0))
    y = jax.lax.conv_general_dilated(y, m.conv2_w, (1, 1), ((1, 1), (1, 1)),
                                     dimension_numbers=dn)
    y = pool(jnp.maximum(y + m.conv2_b[None, :, None, None], 0.0))
    y = y.reshape(y.shape[0], -1)
    y = jnp.maximum(y @ m.fc1_w.T + m.fc1_b, 0.0)
    return y @ m.fc2_w.T + m.fc2_b


# ------------------------------- Classifier ----------------------------------

class ClassifierPallas:
    """JAX/Pallas port of the torch `Classifier` (synthetic conv/pool/fc config)."""

    def __init__(self, key, in_channels=4, image_size=(16, 16),
                 hidden=32, num_classes=10):
        self.C0 = in_channels
        self.H, self.W = image_size
        self.C1, self.C2 = 8, 16
        self.hidden, self.num_classes = hidden, num_classes
        # TODO(synk): crop_images (OpenCV contour crop + bilinear resize) has no
        # Pallas equivalent; this config fixes use_masks=0, i.e. forward(x, z=None).
        self.use_masks = False

        H, W, C0, C1, C2 = self.H, self.W, self.C0, self.C1, self.C2
        assert H % 4 == 0 and W % 4 == 0
        Ho1, Wo1, Ho2, Wo2 = H // 2, W // 2, H // 4, W // 4
        # Lane-width assumptions of the fused kernel (hold for the 4x16x16 config).
        assert W * C1 == LANE and Wo1 * C2 == LANE
        assert 2 * Wo1 * C1 == LANE and 2 * Wo2 * C2 == LANE
        assert hidden <= LANE and num_classes <= LANE

        k = jax.random.split(key, 8)

        def init(kk, shape, fan_in):
            return (jax.random.normal(kk, shape, jnp.float32)
                    * (1.0 / np.sqrt(float(fan_in))))

        # Parameters in torch layouts (also used by the pure-JAX reference).
        self.conv1_w = init(k[0], (C1, C0, 3, 3), C0 * 9)
        self.conv1_b = init(k[1], (C1,), C0 * 9)
        self.conv2_w = init(k[2], (C2, C1, 3, 3), C1 * 9)
        self.conv2_b = init(k[3], (C2,), C1 * 9)
        flat = C2 * Ho2 * Wo2
        self.fc1_w = init(k[4], (hidden, flat), flat)       # torch Linear: (out, in)
        self.fc1_b = init(k[5], (hidden,), flat)
        self.fc2_w = init(k[6], (num_classes, hidden), hidden)
        self.fc2_b = init(k[7], (num_classes,), hidden)
        self.flat = flat

        # ---- one-time layout preprocessing: everything packed into ONE
        # (rows, 128) f32 buffer -> a single weight DMA per core. ----
        t1p = _conv_row_toeplitz(self.conv1_w, W)        # (3*W*C0,  W*C1)
        t2p = _conv_row_toeplitz(self.conv2_w, Wo1)      # (3*Wo1*C1, Wo1*C2)
        s1c = _pool_w_selectors(W, C1)                   # (W*C1,   2*Wo1*C1)
        s2c = _pool_w_selectors(Wo1, C2)                 # (Wo1*C2, 2*Wo2*C2)
        w1f = _fc1_flatten(self.fc1_w, C2, Ho2, Wo2)     # (flat, hidden)
        w2p = np.zeros((LANE, num_classes), np.float32)  # K padded to 128 rows
        w2p[:hidden, :] = np.asarray(self.fc2_w, np.float32).T
        bias = np.zeros((8, LANE), np.float32)           # 4 bias rows + padding
        bias[0, :W * C1] = np.tile(np.asarray(self.conv1_b, np.float32), W)
        bias[1, :Wo1 * C2] = np.tile(np.asarray(self.conv2_b, np.float32), Wo1)
        bias[2, :hidden] = np.asarray(self.fc1_b, np.float32)
        bias[3, :num_classes] = np.asarray(self.fc2_b, np.float32)

        blocks, offs = [], {}

        def add(name, a):
            offs[name] = sum(b.shape[0] for b in blocks)
            blocks.append(_pad_cols(a))

        add("t1", t1p); add("s1", s1c); add("t2", t2p); add("s2", s2c)
        add("w1", w1f); add("w2", w2p); add("b", bias)
        self.wp = jnp.asarray(np.concatenate(blocks, axis=0))   # (1032, 128) f32
        self.offs = offs

    # -------------------------- fused Pallas kernel --------------------------

    def _fused_forward(self, n_batch, nb):
        H, W, C0, C1, C2 = self.H, self.W, self.C0, self.C1, self.C2
        Ho1, Wo1, Ho2, Wo2 = H // 2, W // 2, H // 4, W // 4
        FLAT = self.flat
        K0 = W * C0                     # conv1 input lanes per shift
        K1 = Wo1 * C1                   # pool1 output lanes (= conv2 lanes/shift)
        K2 = Wo2 * C2                   # pool2 output lanes per h-row
        RB1, RB2 = nb * H, nb * Ho1     # per-step conv1 / conv2 row counts
        O = self.offs
        f32 = jnp.float32
        grid = n_batch // nb

        def kernel(x_ref, wp_ref, out_ref, xs1, y1s, xs2, y2s, p2f):
            xv = x_ref[...]                                  # (RB1, K0)
            z1 = jnp.zeros((1, K0), f32)
            z2 = jnp.zeros((1, K1), f32)

            # ---- stage conv1 input as K-packed shifted slabs:
            #      rows (n, h), lanes [x_pad[h] | x_pad[h+1] | x_pad[h+2]] ----
            xs1[:, K0:2 * K0] = xv                           # center shift, all rows
            for n in range(nb):
                b = n * H                                    # 8-sublane aligned stride
                xs1[b + 1:b + H, 0:K0] = xv[b:b + H - 1, :]
                xs1[b:b + H - 1, 2 * K0:3 * K0] = xv[b + 1:b + H, :]
                xs1[b:b + 1, 0:K0] = z1                      # zero H-pad rows only
                xs1[b + H - 1:b + H, 2 * K0:3 * K0] = z1

            # ---- conv1 (3x3, pad 1) + bias + ReLU : ONE GEMM, K = 3*W*C0 ----
            y1 = jnp.dot(xs1[...], wp_ref[O["t1"]:O["t1"] + 3 * K0, :],
                         preferred_element_type=f32)
            y1s[...] = jnp.maximum(y1 + wp_ref[O["b"]:O["b"] + 1, :], 0.0)

            # ---- maxpool 2x2 #1: H via strided row pairs, W via one fused
            #      selector GEMM + half-lane max ----
            h1 = jnp.maximum(y1s[pl.ds(0, RB1 // 2, stride=2), :],
                             y1s[pl.ds(1, RB1 // 2, stride=2), :])
            c1 = jnp.dot(h1, wp_ref[O["s1"]:O["s1"] + W * C1, :],
                         preferred_element_type=f32)
            p1 = jnp.maximum(c1[:, :K1], c1[:, K1:2 * K1])   # (nb*Ho1, K1)

            # ---- stage conv2 input (same K-packing, per-sample stride Ho1) ----
            xs2[:, K1:2 * K1] = p1
            for n in range(nb):
                b = n * Ho1
                xs2[b + 1:b + Ho1, 0:K1] = p1[b:b + Ho1 - 1, :]
                xs2[b:b + Ho1 - 1, 2 * K1:3 * K1] = p1[b + 1:b + Ho1, :]
                xs2[b:b + 1, 0:K1] = z2
                xs2[b + Ho1 - 1:b + Ho1, 2 * K1:3 * K1] = z2

            # ---- conv2 (3x3, pad 1) + bias + ReLU : ONE GEMM ----
            y2 = jnp.dot(xs2[...], wp_ref[O["t2"]:O["t2"] + 3 * K1, :],
                         preferred_element_type=f32)
            y2s[...] = jnp.maximum(y2 + wp_ref[O["b"] + 1:O["b"] + 2, :], 0.0)

            # ---- maxpool 2x2 #2 ----
            h2 = jnp.maximum(y2s[pl.ds(0, RB2 // 2, stride=2), :],
                             y2s[pl.ds(1, RB2 // 2, stride=2), :])
            c2 = jnp.dot(h2, wp_ref[O["s2"]:O["s2"] + Wo1 * C2, :],
                         preferred_element_type=f32)
            p2 = jnp.maximum(c2[:, :K2], c2[:, K2:2 * K2])   # (nb*Ho2, K2)

            # ---- fc1: pack pool2 lane-major per sample -> ONE (nb,256) GEMM ----
            for n in range(nb):
                for ho in range(Ho2):
                    p2f[n:n + 1, ho * K2:(ho + 1) * K2] = \
                        p2[n * Ho2 + ho:n * Ho2 + ho + 1, :]
            hid = jnp.maximum(
                jnp.dot(p2f[...], wp_ref[O["w1"]:O["w1"] + FLAT, :],
                        preferred_element_type=f32)
                + wp_ref[O["b"] + 2:O["b"] + 3, :], 0.0)     # (nb,128), lanes>=HID are 0

            # ---- fc2 -> lane-dense padded logits (nb, 128) ----
            out_ref[...] = (jnp.dot(hid, wp_ref[O["w2"]:O["w2"] + LANE, :],
                                    preferred_element_type=f32)
                            + wp_ref[O["b"] + 3:O["b"] + 4, :])

        wp_rows = self.wp.shape[0]
        grid_spec = pltpu.PrefetchScalarGridSpec(
            num_scalar_prefetch=0,
            grid=(grid,),                                    # batch-block axis
            in_specs=[
                # per-step input rows (NB samples), pipelined across steps
                pl.BlockSpec((None, RB1, K0), lambda i: (i, 0, 0)),
                # single packed weight buffer; constant index -> stays VMEM-resident
                pl.BlockSpec((wp_rows, LANE), lambda i: (0, 0)),
            ],
            out_specs=pl.BlockSpec((None, nb, LANE), lambda i: (i, 0, 0)),
            scratch_shapes=[
                pltpu.VMEM((RB1, 3 * K0), f32),     # conv1 K-packed staged input
                pltpu.VMEM((RB1, W * C1), f32),     # conv1 output rows
                pltpu.VMEM((RB2, 3 * K1), f32),     # conv2 K-packed staged input
                pltpu.VMEM((RB2, Wo1 * C2), f32),   # conv2 output rows
                pltpu.VMEM((nb, FLAT), f32),        # lane-major fc1 input
            ],
        )
        return pl.pallas_call(
            kernel,
            out_shape=jax.ShapeDtypeStruct((grid, nb, LANE), f32),
            grid_spec=grid_spec,
            compiler_params=pltpu.CompilerParams(
                dimension_semantics=("parallel",)),          # megacore-shardable
        )

    def forward(self, x_nchw, z=None):
        # z (masks) ignored: use_masks is False in this synthetic config.
        n = int(x_nchw.shape[0])
        nb = _pick_batch_block(n)
        # NCHW -> rows (n, h) x lanes (w, c); tiny relayout fused into the same
        # jit program as the pallas_call (no separate dispatch).
        x_rows = jnp.transpose(x_nchw.astype(jnp.float32), (0, 2, 3, 1))
        x_rows = x_rows.reshape(n // nb, nb * self.H, self.W * self.C0)
        out = self._fused_forward(n, nb)(x_rows, self.wp)    # (grid, nb, 128)
        return out.reshape(n, LANE)[:, :self.num_classes]


# ----------------------------------- main ------------------------------------

if __name__ == "__main__":
    key = jax.random.PRNGKey(0)
    kx, kp = jax.random.split(key)

    batch, channels, H, W = 2, 4, 16, 16
    x = jax.random.normal(kx, (batch, channels, H, W), jnp.float32)  # NCHW input

    model = ClassifierPallas(kp, in_channels=channels, image_size=(H, W),
                             hidden=32, num_classes=10)

    logits = jax.jit(model.forward)(x)
    logits = jax.block_until_ready(logits)

    assert logits.shape == (batch, 10), logits.shape
    assert bool(jnp.all(jnp.isfinite(logits)))

    # Cross-check the fused kernel against a pure-JAX/XLA reference forward.
    ref = _reference_forward(model, x)
    assert bool(jnp.allclose(logits, ref, atol=1e-3, rtol=1e-3)), \
        (np.asarray(logits), np.asarray(ref))

    print("KERNEL_OK")
</pallas_src>

<mosaic_0001>
module attributes {stable_mosaic.version = 11 : i64} {
  func.func @kernel(%arg0: i32, %arg1: memref<1x16x64xf32, #tpu.memory_space<vmem>>, %arg2: memref<1032x128xf32, #tpu.memory_space<vmem>>, %arg3: memref<1x1x128xf32, #tpu.memory_space<vmem>>, %arg4: memref<16x192xf32, #tpu.memory_space<vmem>>, %arg5: memref<16x128xf32, #tpu.memory_space<vmem>>, %arg6: memref<8x192xf32, #tpu.memory_space<vmem>>, %arg7: memref<8x128xf32, #tpu.memory_space<vmem>>, %arg8: memref<1x256xf32, #tpu.memory_space<vmem>>) attributes {dimension_semantics = [#tpu.dimension_semantics<parallel>], iteration_bounds = array<i64: 2>, scalar_prefetch = 0 : i64, scratch_operands = 5 : i64, tpu.core_type = #tpu.core_type<tc>, window_params = [{transform_indices = @transform_0, window_bounds = array<i64: 1, 16, 64>}, {pipeline_mode = #tpu.pipeline_mode<synchronous>, transform_indices = @transform_1, window_bounds = array<i64: 1032, 128>}, {transform_indices = @transform_2, window_bounds = array<i64: 1, 1, 128>}]} {
    %c0 = arith.constant 0 : index
    %c0_0 = arith.constant 0 : index
    %c0_1 = arith.constant 0 : index
    %0 = vector.load %arg1[%c0, %c0_0, %c0_1] : memref<1x16x64xf32, #tpu.memory_space<vmem>>, vector<1x16x64xf32>
    %1 = vector.shape_cast %0 : vector<1x16x64xf32> to vector<16x64xf32>
    %cst = arith.constant 0.000000e+00 : f32
    %2 = vector.broadcast %cst : f32 to vector<1x64xf32>
    %cst_2 = arith.constant 0.000000e+00 : f32
    %3 = vector.broadcast %cst_2 : f32 to vector<1x64xf32>
    %c0_3 = arith.constant 0 : index
    %c64 = arith.constant 64 : index
    %4 = vector.load %arg4[%c0_3, %c64] : memref<16x192xf32, #tpu.memory_space<vmem>>, vector<16x64xf32>
    tpu.vector_store %arg4[%c0_3, %c64], %1 {strides = array<i32>} : memref<16x192xf32, #tpu.memory_space<vmem>>, vector<16x64xf32>,
    %5 = vector.extract_strided_slice %1 {offsets = [0, 0], sizes = [15, 64], strides = [1, 1]} : vector<16x64xf32> to vector<15x64xf32>
    %c1 = arith.constant 1 : index
    %c0_4 = arith.constant 0 : index
    %6 = vector.load %arg4[%c1, %c0_4] : memref<16x192xf32, #tpu.memory_space<vmem>>, vector<15x64xf32>
    tpu.vector_store %arg4[%c1, %c0_4], %5 {strides = array<i32>} : memref<16x192xf32, #tpu.memory_space<vmem>>, vector<15x64xf32>,
    %7 = vector.extract_strided_slice %1 {offsets = [1, 0], sizes = [15, 64], strides = [1, 1]} : vector<16x64xf32> to vector<15x64xf32>
    %c0_5 = arith.constant 0 : index
    %c128 = arith.constant 128 : index
    %8 = vector.load %arg4[%c0_5, %c128] : memref<16x192xf32, #tpu.memory_space<vmem>>, vector<15x64xf32>
    tpu.vector_store %arg4[%c0_5, %c128], %7 {strides = array<i32>} : memref<16x192xf32, #tpu.memory_space<vmem>>, vector<15x64xf32>,
    %c0_6 = arith.constant 0 : index
    %c0_7 = arith.constant 0 : index
    %9 = vector.load %arg4[%c0_6, %c0_7] : memref<16x192xf32, #tpu.memory_space<vmem>>, vector<1x64xf32>
    tpu.vector_store %arg4[%c0_6, %c0_7], %2 {strides = array<i32>} : memref<16x192xf32, #tpu.memory_space<vmem>>, vector<1x64xf32>,
    %c15 = arith.constant 15 : index
    %c128_8 = arith.constant 128 : index
    %10 = vector.load %arg4[%c15, %c128_8] : memref<16x192xf32, #tpu.memory_space<vmem>>, vector<1x64xf32>
    tpu.vector_store %arg4[%c15, %c128_8], %2 {strides = array<i32>} : memref<16x192xf32, #tpu.memory_space<vmem>>, vector<1x64xf32>,
    %c0_9 = arith.constant 0 : index
    %c0_10 = arith.constant 0 : index
    %11 = vector.load %arg4[%c0_9, %c0_10] : memref<16x192xf32, #tpu.memory_space<vmem>>, vector<16x192xf32>
    %c0_11 = arith.constant 0 : index
    %c0_12 = arith.constant 0 : index
    %12 = vector.load %arg2[%c0_11, %c0_12] : memref<1032x128xf32, #tpu.memory_space<vmem>>, vector<192x128xf32>
    %cst_13 = arith.constant dense<0.000000e+00> : vector<16x128xf32>
    %13 = tpu.matmul %11, %12, %cst_13 {dimension_numbers = #tpu.dot_dimension_numbers<[1], [0], [0], [1], [0, 0, 1, 1], [], []>} : vector<16x192xf32>, vector<192x128xf32>, vector<16x128xf32> -> vector<16x128xf32>
    %c1024 = arith.constant 1024 : index
    %c0_14 = arith.constant 0 : index
    %14 = vector.load %arg2[%c1024, %c0_14] : memref<1032x128xf32, #tpu.memory_space<vmem>>, vector<1x128xf32>
    %15 = vector.broadcast %14 : vector<1x128xf32> to vector<16x128xf32>
    %16 = arith.addf %13, %15 : vector<16x128xf32>
    %cst_15 = arith.constant 0.000000e+00 : f32
    %17 = vector.broadcast %cst_15 : f32 to vector<16x128xf32>
    %18 = arith.maximumf %16, %17 : vector<16x128xf32>
    %c0_16 = arith.constant 0 : index
    %c0_17 = arith.constant 0 : index
    %19 = vector.load %arg5[%c0_16, %c0_17] : memref<16x128xf32, #tpu.memory_space<vmem>>, vector<16x128xf32>
    tpu.vector_store %arg5[%c0_16, %c0_17], %18 {strides = array<i32>} : memref<16x128xf32, #tpu.memory_space<vmem>>, vector<16x128xf32>,
    %c0_18 = arith.constant 0 : index
    %c0_19 = arith.constant 0 : index
    %20 = tpu.strided_load %arg5[%c0_18, %c0_19] {strides = array<i32: 2, 1>} : memref<16x128xf32, #tpu.memory_space<vmem>>, vector<8x128xf32>
    %c1_20 = arith.constant 1 : index
    %c0_21 = arith.constant 0 : index
    %21 = tpu.strided_load %arg5[%c1_20, %c0_21] {strides = array<i32: 2, 1>} : memref<16x128xf32, #tpu.memory_space<vmem>>, vector<8x128xf32>
    %22 = arith.maximumf %20, %21 : vector<8x128xf32>
    %c192 = arith.constant 192 : index
    %c0_22 = arith.constant 0 : index
    %23 = vector.load %arg2[%c192, %c0_22] : memref<1032x128xf32, #tpu.memory_space<vmem>>, vector<128x128xf32>
    %cst_23 = arith.constant dense<0.000000e+00> : vector<8x128xf32>
    %24 = tpu.matmul %22, %23, %cst_23 {dimension_numbers = #tpu.dot_dimension_numbers<[1], [0], [0], [1], [0, 0, 1, 1], [], []>} : vector<8x128xf32>, vector<128x128xf32>, vector<8x128xf32> -> vector<8x128xf32>
    %25 = vector.extract_strided_slice %24 {offsets = [0, 0], sizes = [8, 64], strides = [1, 1]} : vector<8x128xf32> to vector<8x64xf32>
    %26 = vector.extract_strided_slice %24 {offsets = [0, 64], sizes = [8, 64], strides = [1, 1]} : vector<8x128xf32> to vector<8x64xf32>
    %27 = arith.maximumf %25, %26 : vector<8x64xf32>
    %c0_24 = arith.constant 0 : index
    %c64_25 = arith.constant 64 : index
    %28 = vector.load %arg6[%c0_24, %c64_25] : memref<8x192xf32, #tpu.memory_space<vmem>>, vector<8x64xf32>
    tpu.vector_store %arg6[%c0_24, %c64_25], %27 {strides = array<i32>} : memref<8x192xf32, #tpu.memory_space<vmem>>, vector<8x64xf32>,
    %29 = vector.extract_strided_slice %27 {offsets = [0, 0], sizes = [7, 64], strides = [1, 1]} : vector<8x64xf32> to vector<7x64xf32>
    %c1_26 = arith.constant 1 : index
    %c0_27 = arith.constant 0 : index
    %30 = vector.load %arg6[%c1_26, %c0_27] : memref<8x192xf32, #tpu.memory_space<vmem>>, vector<7x64xf32>
    tpu.vector_store %arg6[%c1_26, %c0_27], %29 {strides = array<i32>} : memref<8x192xf32, #tpu.memory_space<vmem>>, vector<7x64xf32>,
    %31 = vector.extract_strided_slice %27 {offsets = [1, 0], sizes = [7, 64], strides = [1, 1]} : vector<8x64xf32> to vector<7x64xf32>
    %c0_28 = arith.constant 0 : index
    %c128_29 = arith.constant 128 : index
    %32 = vector.load %arg6[%c0_28, %c128_29] : memref<8x192xf32, #tpu.memory_space<vmem>>, vector<7x64xf32>
    tpu.vector_store %arg6[%c0_28, %c128_29], %31 {strides = array<i32>} : memref<8x192xf32, #tpu.memory_space<vmem>>, vector<7x64xf32>,
    %c0_30 = arith.constant 0 : index
    %c0_31 = arith.constant 0 : index
    %33 = vector.load %arg6[%c0_30, %c0_31] : memref<8x192xf32, #tpu.memory_space<vmem>>, vector<1x64xf32>
    tpu.vector_store %arg6[%c0_30, %c0_31], %3 {strides = array<i32>} : memref<8x192xf32, #tpu.memory_space<vmem>>, vector<1x64xf32>,
    %c7 = arith.constant 7 : index
    %c128_32 = arith.constant 128 : index
    %34 = vector.load %arg6[%c7, %c128_32] : memref<8x192xf32, #tpu.memory_space<vmem>>, vector<1x64xf32>
    tpu.vector_store %arg6[%c7, %c128_32], %3 {strides = array<i32>} : memref<8x192xf32, #tpu.memory_space<vmem>>, vector<1x64xf32>,
    %c0_33 = arith.constant 0 : index
    %c0_34 = arith.constant 0 : index
    %35 = vector.load %arg6[%c0_33, %c0_34] : memref<8x192xf32, #tpu.memory_space<vmem>>, vector<8x192xf32>
    %c320 = arith.constant 320 : index
    %c0_35 = arith.constant 0 : index
    %36 = vector.load %arg2[%c320, %c0_35] : memref<1032x128xf32, #tpu.memory_space<vmem>>, vector<192x128xf32>
    %cst_36 = arith.constant dense<0.000000e+00> : vector<8x128xf32>
    %37 = tpu.matmul %35, %36, %cst_36 {dimension_numbers = #tpu.dot_dimension_numbers<[1], [0], [0], [1], [0, 0, 1, 1], [], []>} : vector<8x192xf32>, vector<192x128xf32>, vector<8x128xf32> -> vector<8x128xf32>
    %c1025 = arith.constant 1025 : index
    %c0_37 = arith.constant 0 : index
    %38 = vector.load %arg2[%c1025, %c0_37] : memref<1032x128xf32, #tpu.memory_space<vmem>>, vector<1x128xf32>
    %39 = vector.broadcast %38 : vector<1x128xf32> to vector<8x128xf32>
    %40 = arith.addf %37, %39 : vector<8x128xf32>
    %cst_38 = arith.constant 0.000000e+00 : f32
    %41 = vector.broadcast %cst_38 : f32 to vector<8x128xf32>
    %42 = arith.maximumf %40, %41 : vector<8x128xf32>
    %c0_39 = arith.constant 0 : index
    %c0_40 = arith.constant 0 : index
    %43 = vector.load %arg7[%c0_39, %c0_40] : memref<8x128xf32, #tpu.memory_space<vmem>>, vector<8x128xf32>
    tpu.vector_store %arg7[%c0_39, %c0_40], %42 {strides = array<i32>} : memref<8x128xf32, #tpu.memory_space<vmem>>, vector<8x128xf32>,
    %c0_41 = arith.constant 0 : index
    %c0_42 = arith.constant 0 : index
    %44 = tpu.strided_load %arg7[%c0_41, %c0_42] {strides = array<i32: 2, 1>} : memref<8x128xf32, #tpu.memory_space<vmem>>, vector<4x128xf32>
    %c1_43 = arith.constant 1 : index
    %c0_44 = arith.constant 0 : index
    %45 = tpu.strided_load %arg7[%c1_43, %c0_44] {strides = array<i32: 2, 1>} : memref<8x128xf32, #tpu.memory_space<vmem>>, vector<4x128xf32>
    %46 = arith.maximumf %44, %45 : vector<4x128xf32>
    %c512 = arith.constant 512 : index
    %c0_45 = arith.constant 0 : index
    %47 = vector.load %arg2[%c512, %c0_45] : memref<1032x128xf32, #tpu.memory_space<vmem>>, vector<128x128xf32>
    %cst_46 = arith.constant dense<0.000000e+00> : vector<4x128xf32>
    %48 = tpu.matmul %46, %47, %cst_46 {dimension_numbers = #tpu.dot_dimension_numbers<[1], [0], [0], [1], [0, 0, 1, 1], [], []>} : vector<4x128xf32>, vector<128x128xf32>, vector<4x128xf32> -> vector<4x128xf32>
    %49 = vector.extract_strided_slice %48 {offsets = [0, 0], sizes = [4, 64], strides = [1, 1]} : vector<4x128xf32> to vector<4x64xf32>
    %50 = vector.extract_strided_slice %48 {offsets = [0, 64], sizes = [4, 64], strides = [1, 1]} : vector<4x128xf32> to vector<4x64xf32>
    %51 = arith.maximumf %49, %50 : vector<4x64xf32>
    %52 = vector.extract_strided_slice %51 {offsets = [0, 0], sizes = [1, 64], strides = [1, 1]} : vector<4x64xf32> to vector<1x64xf32>
    %c0_47 = arith.constant 0 : index
    %c0_48 = arith.constant 0 : index
    %53 = vector.load %arg8[%c0_47, %c0_48] : memref<1x256xf32, #tpu.memory_space<vmem>>, vector<1x64xf32>
    tpu.vector_store %arg8[%c0_47, %c0_48], %52 {strides = array<i32>} : memref<1x256xf32, #tpu.memory_space<vmem>>, vector<1x64xf32>,
    %54 = vector.extract_strided_slice %51 {offsets = [1, 0], sizes = [1, 64], strides = [1, 1]} : vector<4x64xf32> to vector<1x64xf32>
    %c0_49 = arith.constant 0 : index
    %c64_50 = arith.constant 64 : index
    %55 = vector.load %arg8[%c0_49, %c64_50] : memref<1x256xf32, #tpu.memory_space<vmem>>, vector<1x64xf32>
    tpu.vector_store %arg8[%c0_49, %c64_50], %54 {strides = array<i32>} : memref<1x256xf32, #tpu.memory_space<vmem>>, vector<1x64xf32>,
    %56 = vector.extract_strided_slice %51 {offsets = [2, 0], sizes = [1, 64], strides = [1, 1]} : vector<4x64xf32> to vector<1x64xf32>
    %c0_51 = arith.constant 0 : index
    %c128_52 = arith.constant 128 : index
    %57 = vector.load %arg8[%c0_51, %c128_52] : memref<1x256xf32, #tpu.memory_space<vmem>>, vector<1x64xf32>
    tpu.vector_store %arg8[%c0_51, %c128_52], %56 {strides = array<i32>} : memref<1x256xf32, #tpu.memory_space<vmem>>, vector<1x64xf32>,
    %58 = vector.extract_strided_slice %51 {offsets = [3, 0], sizes = [1, 64], strides = [1, 1]} : vector<4x64xf32> to vector<1x64xf32>
    %c0_53 = arith.constant 0 : index
    %c192_54 = arith.constant 192 : index
    %59 = vector.load %arg8[%c0_53, %c192_54] : memref<1x256xf32, #tpu.memory_space<vmem>>, vector<1x64xf32>
    tpu.vector_store %arg8[%c0_53, %c192_54], %58 {strides = array<i32>} : memref<1x256xf32, #tpu.memory_space<vmem>>, vector<1x64xf32>,
    %c0_55 = arith.constant 0 : index
    %c0_56 = arith.constant 0 : index
    %60 = vector.load %arg8[%c0_55, %c0_56] : memref<1x256xf32, #tpu.memory_space<vmem>>, vector<1x256xf32>
    %c640 = arith.constant 640 : index
    %c0_57 = arith.constant 0 : index
    %61 = vector.load %arg2[%c640, %c0_57] : memref<1032x128xf32, #tpu.memory_space<vmem>>, vector<256x128xf32>
    %cst_58 = arith.constant dense<0.000000e+00> : vector<1x128xf32>
    %62 = tpu.matmul %60, %61, %cst_58 {dimension_numbers = #tpu.dot_dimension_numbers<[1], [0], [0], [1], [0, 0, 1, 1], [], []>} : vector<1x256xf32>, vector<256x128xf32>, vector<1x128xf32> -> vector<1x128xf32>
    %c1026 = arith.constant 1026 : index
    %c0_59 = arith.constant 0 : index
    %63 = vector.load %arg2[%c1026, %c0_59] : memref<1032x128xf32, #tpu.memory_space<vmem>>, vector<1x128xf32>
    %64 = arith.addf %62, %63 : vector<1x128xf32>
    %cst_60 = arith.constant 0.000000e+00 : f32
    %65 = vector.broadcast %cst_60 : f32 to vector<1x128xf32>
    %66 = arith.maximumf %64, %65 : vector<1x128xf32>
    %c896 = arith.constant 896 : index
    %c0_61 = arith.constant 0 : index
    %67 = vector.load %arg2[%c896, %c0_61] : memref<1032x128xf32, #tpu.memory_space<vmem>>, vector<128x128xf32>
    %cst_62 = arith.constant dense<0.000000e+00> : vector<1x128xf32>
    %68 = tpu.matmul %66, %67, %cst_62 {dimension_numbers = #tpu.dot_dimension_numbers<[1], [0], [0], [1], [0, 0, 1, 1], [], []>} : vector<1x128xf32>, vector<128x128xf32>, vector<1x128xf32> -> vector<1x128xf32>
    %c1027 = arith.constant 1027 : index
    %c0_63 = arith.constant 0 : index
    %69 = vector.load %arg2[%c1027, %c0_63] : memref<1032x128xf32, #tpu.memory_space<vmem>>, vector<1x128xf32>
    %70 = arith.addf %68, %69 : vector<1x128xf32>
    %c0_64 = arith.constant 0 : index
    %c0_65 = arith.constant 0 : index
    %c0_66 = arith.constant 0 : index
    %71 = vector.load %arg3[%c0_64, %c0_65, %c0_66] : memref<1x1x128xf32, #tpu.memory_space<vmem>>, vector<1x1x128xf32>
    %72 = vector.shape_cast %71 : vector<1x1x128xf32> to vector<1x128xf32>
    %73 = vector.shape_cast %70 : vector<1x128xf32> to vector<1x1x128xf32>
    tpu.vector_store %arg3[%c0_64, %c0_65, %c0_66], %73 {strides = array<i32>} : memref<1x1x128xf32, #tpu.memory_space<vmem>>, vector<1x1x128xf32>,
    return
  }
  func.func @transform_0(%arg0: i32) -> (i32, i32, i32) {
    %c0_i32 = arith.constant 0 : i32
    %c0_i32_0 = arith.constant 0 : i32
    %c0_i32_1 = arith.constant 0 : i32
    return %arg0, %c0_i32, %c0_i32_0 : i32, i32, i32
  }
  func.func @transform_1(%arg0: i32) -> (i32, i32) {
    %c0_i32 = arith.constant 0 : i32
    %c0_i32_0 = arith.constant 0 : i32
    %c0_i32_1 = arith.constant 0 : i32
    return %c0_i32, %c0_i32_0 : i32, i32
  }
  func.func @transform_2(%arg0: i32) -> (i32, i32, i32) {
    %c0_i32 = arith.constant 0 : i32
    %c0_i32_0 = arith.constant 0 : i32
    %c0_i32_1 = arith.constant 0 : i32
    return %arg0, %c0_i32, %c0_i32_0 : i32, i32, i32
  }
}

</mosaic_0001>

<llo_original>
// kernel: forward.1
$region0: #{forward.1}
  #allocation0 [shape = 'u32[]', space=smem, size = 0x4, offset = 0x4, fixed_abs, tag = 'smem constant byte address 0x4 - core index']
  #allocation1 [shape = 'u32[144,128]{1,0:T(1,128)}', space=vmem, size = 0x12000, scoped, tag = 'internal scratch']
  #allocation2 [shape = 'f32[16,192]{1,0:T(8,128)}', space=vmem, size = 0x4000, scoped, tag = 'scratch operand']
  #allocation3 [shape = 'f32[16,128]{1,0:T(8,128)}', space=vmem, size = 0x2000, scoped, tag = 'scratch operand']
  #allocation4 [shape = 'f32[8,192]{1,0:T(8,128)}', space=vmem, size = 0x2000, scoped, tag = 'scratch operand']
  #allocation5 [shape = 'f32[8,128]{1,0:T(8,128)}', space=vmem, size = 0x1000, scoped, tag = 'scratch operand']
  #allocation6 [shape = 'f32[1,256]{1,0:T(1,128)}', space=vmem, size = 0x400, scoped, tag = 'scratch operand']
  %s0 = inlined_call_operand.vmem [shape: f32[2,16,64], index: 0, kind: input, shape index: {}]
  %s1 = inlined_call_operand.hbm [shape: f32[1032,128], index: 1, kind: input, shape index: {}]
  %s2 = inlined_call_operand.hbm [shape: f32[2,1,128], index: 2, kind: output, shape index: {}]
  %s3 = sld [smem:[#allocation0]]
  $region45: #{forward.1} parent=0
    _
  %s5 = ssub.s32 1, %s3
  %s6 = scalar_select 0, %s5, %s3
  $region1: #{forward.1} parent=0
    #allocation7 [shape = 'u8[528384]{0}', space=vmem, size = 0x81000, scoped, tag = 'input window, operand 1, single buffered']
    #allocation8 [shape = 's32[2]{0}', space=sflag, size = 0x8, scoped, tag = 'scoped memory for forward.1']
    #allocation9 [shape = 's32[2]{0}', space=sflag, size = 0x8, scoped, tag = 'scoped memory for forward.1']
    #allocation10 [shape = 'u8[1024]{0}', space=vmem, size = 0x400, scoped, tag = 'output window, operand 0']
    %7 = vsyncpa [#allocation8], 0
    %8 = vsyncpa [#allocation9], 0
    %s9 = scalar_lea.sflag [#allocation9], 1
    %10 = vsyncpa %s9, 0
    loop: start=0, step=1, limit=4
    $region2: #{forward.1} parent=1 // loop_pre_header
      _
    $region3: #{forward.1} parent=1 // loop_header
      %s12 = sphi 0, %s16
      %p13 = scmp.ge.s32.totalorder %s12, 4
      %s22 = sphi 0, %s24
      %s25 = sphi 0, %s22
      %s26 = sphi 0, %s25
      %s42 = sphi 0, %s26
      %s46 = sphi 0, %s46
      %s48 = sphi 0, %s46
      %s49 = sphi 0, %s48
      %s63 = sphi 0, %s49
      %s69 = sphi 0, %s71
      %s72 = sphi 0, %s69
      %s73 = sphi 0, %s72
      %s89 = sphi 0, %s73
    $region4: #{forward.1} parent=1 // loop_header_branch
      %15 = sbr.rel (%p13) target = $region8
    $region5: #{forward.1} parent=1 // loop_body
      %s17 = ssub.s32 %s12, 1
      %s18 = ssub.s32 %s12, 2
      %s19 = sadd.s32 %s12, 1
      %s20 = ssub.s32 %s12, %s19
      %p21 = scmp.eq.s32.totalorder %s20, 0
      %s23 = sadd.s32 %s22, 1
      %s24 = scalar_select %p21, %s22, %s23
      %p27 = pneg %p21
      %p28 = scmp.eq.s32.totalorder %s12, 1
      %p29 = por %p27, %p28
      %p30 = scmp.ne.s32.totalorder %s22, %s25
      %p31 = scmp.eq.s32.totalorder %s12, 0
      %p32 = por %p30, %p31
      %p33 = scmp.ne.s32.totalorder %s22, %s25
      %p34 = scmp.eq.s32.totalorder %s17, 1
      %p35 = por %p33, %p34
      %p36 = scmp.ne.s32.totalorder %s25, %s26
      %p37 = scmp.eq.s32.totalorder %s17, 0
      %p38 = por %p36, %p37
      %p39 = scmp.ne.s32.totalorder %s25, %s26
      %p40 = scmp.eq.s32.totalorder %s18, 1
      %p41 = por %p39, %p40
      %p43 = scmp.ne.s32.totalorder %s26, %s42
      %p44 = scmp.eq.s32.totalorder %s18, 0
      %p45 = por %p43, %p44
      %s47 = sadd.s32 %s46, 1
      %p50 = scmp.eq.s32.totalorder %s12, 1
      %p51 = scmp.ne.s32.totalorder %s46, %s48
      %p52 = scmp.eq.s32.totalorder %s12, 0
      %p53 = por %p51, %p52
      %p54 = scmp.ne.s32.totalorder %s46, %s48
      %p55 = scmp.eq.s32.totalorder %s17, 1
      %p56 = por %p54, %p55
      %p57 = scmp.ne.s32.totalorder %s48, %s49
      %p58 = scmp.eq.s32.totalorder %s17, 0
      %p59 = por %p57, %p58
      %p60 = scmp.ne.s32.totalorder %s48, %s49
      %p61 = scmp.eq.s32.totalorder %s18, 1
      %p62 = por %p60, %p61
      %p64 = scmp.ne.s32.totalorder %s49, %s63
      %p65 = scmp.eq.s32.totalorder %s18, 0
      %p66 = por %p64, %p65
      %s67 = ssub.s32 %s12, %s19
      %p68 = scmp.eq.s32.totalorder %s67, 0
      %s70 = sadd.s32 %s69, 1
      %s71 = scalar_select %p68, %s69, %s70
      %p74 = pneg %p68
      %p75 = scmp.eq.s32.totalorder %s12, 1
      %p76 = por %p74, %p75
      %p77 = scmp.ne.s32.totalorder %s69, %s72
      %p78 = scmp.eq.s32.totalorder %s12, 0
      %p79 = por %p77, %p78
      %p80 = scmp.ne.s32.totalorder %s69, %s72
      %p81 = scmp.eq.s32.totalorder %s17, 1
      %p82 = por %p80, %p81
      %p83 = scmp.ne.s32.totalorder %s72, %s73
      %p84 = scmp.eq.s32.totalorder %s17, 0
      %p85 = por %p83, %p84
      %p86 = scmp.ne.s32.totalorder %s72, %s73
      %p87 = scmp.eq.s32.totalorder %s18, 1
      %p88 = por %p86, %p87
      %p90 = scmp.ne.s32.totalorder %s73, %s89
      %p91 = scmp.eq.s32.totalorder %s18, 0
      %p92 = por %p90, %p91
      %p93 = scmp.le.s32.totalorder 1, %s12
      %p94 = scmp.lt.s32.totalorder %s12, 3
      %p95 = pnand %p93, %p94
      %p96 = pneg %p95
      // Predicated region
      $region9: #{forward.1} parent=5 // pred_check
        _
      $region10: #{forward.1} parent=5 // pred_check_branch
        %98 = sbr.rel (%p95) target = $region12
      $region11: #{forward.1} parent=5 // pred_region
        %s99 = ssub.s32 %s12, 1
        // Predicated region
        $region13: #{forward.1} parent=11 // pred_check
          %p100 = pneg %p59
        $region14: #{forward.1} parent=11 // pred_check_branch
          %102 = sbr.rel (%p100) target = $region16
        $region15: #{forward.1} parent=11 // pred_region
          %s104 = ssub.s32 16512, 16512
          %105 = vsyncadd [#allocation8], %s104
          %s106 = sshll.u32 [#allocation7], 4
          %s107 = int_to_ptr.vmem [resolvable:$true] %s106
          %112 = dma.hbm_to_vmem [thread:$0]  %s1, 16512, %s107, [#allocation8], 128, 128, 8
        $region16: #{forward.1} parent=11 // pred_fallthru
          _
      $region12: #{forward.1} parent=5 // pred_fallthru
        _
      %p113 = scmp.lt.s32.totalorder %s12, 2
      // Predicated region
      $region17: #{forward.1} parent=5 // pred_check
        %p114 = pneg %p113
      $region18: #{forward.1} parent=5 // pred_check_branch
        %116 = sbr.rel (%p114) target = $region20
      $region19: #{forward.1} parent=5 // pred_region
        // Predicated region
        $region21: #{forward.1} parent=19 // pred_check
          %p117 = pneg %p32
        $region22: #{forward.1} parent=19 // pred_check_branch
          %119 = sbr.rel (%p117) target = $region24
        $region23: #{forward.1} parent=19 // pred_region
          %p120 = scmp.lt.s32.totalorder %s12, 1
          %s121 = scalar_select %p120, %s12, 1
          %s122 = smul.addr %s121, 2
          %s123 = smul.addr %s122, 8
          %s124 = scalar_lea.vmem %s0, %s123
        $region24: #{forward.1} parent=19 // pred_fallthru
          _
      $region20: #{forward.1} parent=5 // pred_fallthru
        _
      %p125 = scmp.le.s32.totalorder 1, %s12
      %p126 = scmp.lt.s32.totalorder %s12, 3
      %p127 = pnand %p125, %p126
      %p128 = pneg %p127
      // Predicated region
      $region25: #{forward.1} parent=5 // pred_check
        _
      $region26: #{forward.1} parent=5 // pred_check_branch
        %130 = sbr.rel (%p127) target = $region28
      $region27: #{forward.1} parent=5 // pred_region
        %s131 = ssub.s32 %s12, 1
        // Predicated region
        $region29: #{forward.1} parent=27 // pred_check
          %p132 = pneg %p59
        $region30: #{forward.1} parent=27 // pred_check_branch
          %134 = sbr.rel (%p132) target = $region32
        $region31: #{forward.1} parent=27 // pred_region
          %135 = dma.done [#allocation8], 16512
        $region32: #{forward.1} parent=27 // pred_fallthru
          _
        %p136 = scmp.lt.s32.totalorder %s17, 1
        %s137 = scalar_select %p136, %s17, 1
        %s138 = smul.addr %s137, 2
        %s139 = smul.addr %s138, 8
        %s140 = scalar_lea.vmem %s0, %s139
        %p141 = pneg %p38
        %p142 = pneg %p35
        %p143 = pneg %p59
        %p144 = pneg %p56
        %p145 = pneg %p85
        %p146 = pneg %p82
        %s147 = sand.u32 %s72, 1
        %s148 = scalar_lea.sflag [#allocation9], %s147
        %s149 = sand.u32 %s72, 1
        %s150 = scalar_lea.vmem [#allocation10], %s149
        %p151 = scmp.lt.s32.totalorder %s17, 1
        %s152 = scalar_select %p151, %s17, 1
        %s153 = smul.addr %s152, 2
        %s154 = smul.addr %s153, 8
        %s155 = scalar_lea.vmem %s0, %s154
        %v156 = vld [vmem:[%s155] sm:$0xff]
        %v157 = vld [vmem:[%s155 + $0x8] sm:$0xff]
        %160 = vrot.lane.b32.xlu0 %v156, 64
        %v161 = vpop.permute.xlu0 %160
        %162 = vrot.lane.b32.xlu0 %v157, 64
        %v163 = vpop.permute.xlu0 %162
        %vm166 = vcmask 1048064
        %167 = vst.msk [vmem:[#allocation2] sm:$0xff] %vm166, %v161
        %168 = vst.msk [vmem:[#allocation2 + $0x10] sm:$0xff] %vm166, %v163
        %vm169 = vcmask 1040384
        %v170 = vrot.slane %v156, 7
        %v171 = vrot.slane %v157, 7
        %v172 = vsel %vm169, %v170, %v171
        %vm175 = vcmask 523265
        %176 = vst.msk [vmem:[#allocation2] sm:$0xfe] %vm175, %v170
        %vm177 = vcmask 523264
        %178 = vst.msk [vmem:[#allocation2 + $0x10] sm:$0xff] %vm177, %v172
        %vm179 = vcmask 1046528
        %v180 = vrot.slane %v156, 1
        %v181 = vrot.slane %v157, 1
        %v182 = vsel %vm179, %v180, %v181
        %185 = vst.msk [vmem:[#allocation2 + $0x8] sm:$0xff] %vm177, %v182
        %vm186 = vcmask 522240
        %187 = vst.msk [vmem:[#allocation2 + $0x18] sm:$0x7f] %vm186, %v181
        %vm188 = vcmask 516096
        %189 = vst.msk [vmem:[#allocation2] sm:$0x1] %vm188, 0.0
        %190 = vst.msk [vmem:[#allocation2 + $0x1f] sm:$0x1] %vm188, 0.0
        %v191 = vld [vmem:[#allocation2] sm:$0xff]
        %v192 = vld [vmem:[#allocation2 + $0x8] sm:$0xff]
        %v193 = vld [vmem:[#allocation2 + $0x10] sm:$0xff]
        %v194 = vld [vmem:[#allocation2 + $0x18] sm:$0xff]
        %v195 = vld [vmem:[#allocation7] sm:$0xff]
        %v196 = vld [vmem:[#allocation7 + $0x8] sm:$0xff]
        %v197 = vld [vmem:[#allocation7 + $0x10] sm:$0xff]
        %v198 = vld [vmem:[#allocation7 + $0x18] sm:$0xff]
        %v199 = vld [vmem:[#allocation7 + $0x20] sm:$0xff]
        %v200 = vld [vmem:[#allocation7 + $0x28] sm:$0xff]
        %v201 = vld [vmem:[#allocation7 + $0x30] sm:$0xff]
        %v202 = vld [vmem:[#allocation7 + $0x38] sm:$0xff]
        %v203 = vld [vmem:[#allocation7 + $0x40] sm:$0xff]
        %v204 = vld [vmem:[#allocation7 + $0x48] sm:$0xff]
        %v205 = vld [vmem:[#allocation7 + $0x50] sm:$0xff]
        %v206 = vld [vmem:[#allocation7 + $0x58] sm:$0xff]
        %v207 = vld [vmem:[#allocation7 + $0x60] sm:$0xff]
        %v208 = vld [vmem:[#allocation7 + $0x68] sm:$0xff]
        %v209 = vld [vmem:[#allocation7 + $0x70] sm:$0xff]
        %v210 = vld [vmem:[#allocation7 + $0x78] sm:$0xff]
        %v211 = vld [vmem:[#allocation7 + $0x80] sm:$0xff]
        %v212 = vld [vmem:[#allocation7 + $0x88] sm:$0xff]
        %v213 = vld [vmem:[#allocation7 + $0x90] sm:$0xff]
        %v214 = vld [vmem:[#allocation7 + $0x98] sm:$0xff]
        %v215 = vld [vmem:[#allocation7 + $0xa0] sm:$0xff]
        %v216 = vld [vmem:[#allocation7 + $0xa8] sm:$0xff]
        %v217 = vld [vmem:[#allocation7 + $0xb0] sm:$0xff]
        %v218 = vld [vmem:[#allocation7 + $0xb8] sm:$0xff]
        %v219 = vld [vmem:[#allocation7 + $0x400] sm:$0x1]
        %v220 = vlaneseq
        %v221 = vshrl.u32 %v220, 7
        %v222 = vsub.s32 0, %v221
        %v223 = vrot.slane %v219, %v222
        %v225 = vsel %vm177, %v192, 0
        %v228 = vsel %vm177, %v194, 0
        %230 = vmatprep.subr.mxu0 0.0
        %231 = vmatpush1.msra.mxu0 %v210
        %232 = vmatprep.subr.mxu0 0.0
        %233 = vmatpush1.msra.mxu0 %v209
        %234 = vmatprep.subr.mxu0 0.0
        %235 = vmatpush1.msra.mxu0 %v208
        %236 = vmatprep.subr.mxu0 0.0
        %237 = vmatpush1.msra.mxu0 %v207
        %238 = vmatprep.subr.mxu0 0.0
        %239 = vmatpush1.msra.mxu0 %v206
        %240 = vmatprep.subr.mxu0 0.0
        %241 = vmatpush1.msra.mxu0 %v205
        %242 = vmatprep.subr.mxu0 0.0
        %243 = vmatpush1.msra.mxu0 %v204
        %244 = vmatprep.subr.mxu0 0.0
        %245 = vmatpush1.msra.mxu0 %v203
        %246 = vmatprep.subr.mxu0 0.0
        %247 = vmatpush1.msra.mxu0 %v202
        %248 = vmatprep.subr.mxu0 0.0
        %249 = vmatpush1.msra.mxu0 %v201
        %250 = vmatprep.subr.mxu0 0.0
        %251 = vmatpush1.msra.mxu0 %v200
        %252 = vmatprep.subr.mxu0 0.0
        %253 = vmatpush1.msra.mxu0 %v199
        %254 = vmatprep.subr.mxu0 0.0
        %255 = vmatpush1.msra.mxu0 %v198
        %256 = vmatprep.subr.mxu0 0.0
        %257 = vmatpush1.msra.mxu0 %v197
        %258 = vmatprep.subr.mxu0 0.0
        %259 = vmatpush1.msra.mxu0 %v196
        %260 = vmatprep.subr.mxu0 0.0
        %261 = vmatpush1.msra.mxu0 %v195
        %262 = vmatprep.subr.mxu0 0.0
        %263 = vmatpush2.msra.mxu0 0.0
        %264 = vmatprep.subr.mxu0 0.0
        %265 = vmatpush2.msra.mxu0 0.0
        %266 = vmatprep.subr.mxu0 0.0
        %267 = vmatpush2.msra.mxu0 0.0
        %268 = vmatprep.subr.mxu0 0.0
        %269 = vmatpush2.msra.mxu0 0.0
        %270 = vmatprep.subr.mxu0 0.0
        %271 = vmatpush2.msra.mxu0 0.0
        %272 = vmatprep.subr.mxu0 0.0
        %273 = vmatpush2.msra.mxu0 0.0
        %274 = vmatprep.subr.mxu0 0.0
        %275 = vmatpush2.msra.mxu0 0.0
        %276 = vmatprep.subr.mxu0 0.0
        %277 = vmatpush2.msra.mxu0 0.0
        %278 = vmatprep.subr.mxu0 0.0
        %279 = vmatpush2.msra.mxu0 %v218
        %280 = vmatprep.subr.mxu0 0.0
        %281 = vmatpush2.msra.mxu0 %v217
        %282 = vmatprep.subr.mxu0 0.0
        %283 = vmatpush2.msra.mxu0 %v216
        %284 = vmatprep.subr.mxu0 0.0
        %285 = vmatpush2.msra.mxu0 %v215
        %286 = vmatprep.subr.mxu0 0.0
        %287 = vmatpush2.msra.mxu0 %v214
        %288 = vmatprep.subr.mxu0 0.0
        %289 = vmatpush2.msra.mxu0 %v213
        %290 = vmatprep.subr.mxu0 0.0
        %291 = vmatpush2.msra.mxu0 %v212
        %292 = vmatprep.subr.mxu0 0.0
        %293 = vmatpush2.msra.mxu0 %v211
        %294 = vmatprep.mubr.f32.mxu0 %v225
        %295 = vmatmul.mubr.f32.gmra.mxu0 %v191
        %v296 = vpop.f32.mrf.mxu0
        %v297 = vadd.f32 %v223, %v296
        %v298 = vpop.f32.mrf.mxu0
        %299 = vmatprep.mubr.f32.mxu0 %v228
        %300 = vmatmul.mubr.f32.gmra.mxu0 %v193
        %v301 = vpop.f32.mrf.mxu0
        %v302 = vadd.f32 %v223, %v301
        %v303 = vpop.f32.mrf.mxu0
        %304 = vdwg.mxu0
        %v305 = vmax.f32 %v297, 0.0
        %v306 = vmax.f32 %v302, 0.0
        %307 = vst [vmem:[#allocation3] sm:$0xff] %v305
        %308 = vst [vmem:[#allocation3 + $0x8] sm:$0xff] %v306
        %v309 = vld [vmem:[#allocation3] ss:$2 sm:$0xff]
        %s310 = scalar_lea.vmem [#allocation3], 1
        %v311 = vld [vmem:[%s310] ss:$2 sm:$0xff]
        %v312 = vmax.f32 %v309, %v311
        %v313 = vld [vmem:[#allocation7 + $0xc0] sm:$0xff]
        %v314 = vld [vmem:[#allocation7 + $0xc8] sm:$0xff]
        %v315 = vld [vmem:[#allocation7 + $0xd0] sm:$0xff]
        %v316 = vld [vmem:[#allocation7 + $0xd8] sm:$0xff]
        %v317 = vld [vmem:[#allocation7 + $0xe0] sm:$0xff]
        %v318 = vld [vmem:[#allocation7 + $0xe8] sm:$0xff]
        %v319 = vld [vmem:[#allocation7 + $0xf0] sm:$0xff]
        %v320 = vld [vmem:[#allocation7 + $0xf8] sm:$0xff]
        %v321 = vld [vmem:[#allocation7 + $0x100] sm:$0xff]
        %v322 = vld [vmem:[#allocation7 + $0x108] sm:$0xff]
        %v323 = vld [vmem:[#allocation7 + $0x110] sm:$0xff]
        %v324 = vld [vmem:[#allocation7 + $0x118] sm:$0xff]
        %v325 = vld [vmem:[#allocation7 + $0x120] sm:$0xff]
        %v326 = vld [vmem:[#allocation7 + $0x128] sm:$0xff]
        %v327 = vld [vmem:[#allocation7 + $0x130] sm:$0xff]
        %v328 = vld [vmem:[#allocation7 + $0x138] sm:$0xff]
        %329 = vmatprep.subr.mxu0 0.0
        %330 = vmatpush1.msra.mxu0 %v328
        %331 = vmatprep.subr.mxu0 0.0
        %332 = vmatpush1.msra.mxu0 %v327
        %333 = vmatprep.subr.mxu0 0.0
        %334 = vmatpush1.msra.mxu0 %v326
        %335 = vmatprep.subr.mxu0 0.0
        %336 = vmatpush1.msra.mxu0 %v325
        %337 = vmatprep.subr.mxu0 0.0
        %338 = vmatpush1.msra.mxu0 %v324
        %339 = vmatprep.subr.mxu0 0.0
        %340 = vmatpush1.msra.mxu0 %v323
        %341 = vmatprep.subr.mxu0 0.0
        %342 = vmatpush1.msra.mxu0 %v322
        %343 = vmatprep.subr.mxu0 0.0
        %344 = vmatpush1.msra.mxu0 %v321
        %345 = vmatprep.subr.mxu0 0.0
        %346 = vmatpush1.msra.mxu0 %v320
        %347 = vmatprep.subr.mxu0 0.0
        %348 = vmatpush1.msra.mxu0 %v319
        %349 = vmatprep.subr.mxu0 0.0
        %350 = vmatpush1.msra.mxu0 %v318
        %351 = vmatprep.subr.mxu0 0.0
        %352 = vmatpush1.msra.mxu0 %v317
        %353 = vmatprep.subr.mxu0 0.0
        %354 = vmatpush1.msra.mxu0 %v316
        %355 = vmatprep.subr.mxu0 0.0
        %356 = vmatpush1.msra.mxu0 %v315
        %357 = vmatprep.subr.mxu0 0.0
        %358 = vmatpush1.msra.mxu0 %v314
        %359 = vmatprep.subr.mxu0 0.0
        %360 = vmatpush1.msra.mxu0 %v313
        %361 = vmatprep.subr.mxu0 0.0
        %362 = vmatpush2.msra.mxu0 0.0
        %363 = vmatprep.subr.mxu0 0.0
        %364 = vmatpush2.msra.mxu0 0.0
        %365 = vmatprep.subr.mxu0 0.0
        %366 = vmatpush2.msra.mxu0 0.0
        %367 = vmatprep.subr.mxu0 0.0
        %368 = vmatpush2.msra.mxu0 0.0
        %369 = vmatprep.subr.mxu0 0.0
        %370 = vmatpush2.msra.mxu0 0.0
        %371 = vmatprep.subr.mxu0 0.0
        %372 = vmatpush2.msra.mxu0 0.0
        %373 = vmatprep.subr.mxu0 0.0
        %374 = vmatpush2.msra.mxu0 0.0
        %375 = vmatprep.subr.mxu0 0.0
        %376 = vmatpush2.msra.mxu0 0.0
        %377 = vmatprep.subr.mxu0 0.0
        %378 = vmatpush2.msra.mxu0 0.0
        %379 = vmatprep.subr.mxu0 0.0
        %380 = vmatpush2.msra.mxu0 0.0
        %381 = vmatprep.subr.mxu0 0.0
        %382 = vmatpush2.msra.mxu0 0.0
        %383 = vmatprep.subr.mxu0 0.0
        %384 = vmatpush2.msra.mxu0 0.0
        %385 = vmatprep.subr.mxu0 0.0
        %386 = vmatpush2.msra.mxu0 0.0
        %387 = vmatprep.subr.mxu0 0.0
        %388 = vmatpush2.msra.mxu0 0.0
        %389 = vmatprep.subr.mxu0 0.0
        %390 = vmatpush2.msra.mxu0 0.0
        %391 = vmatprep.subr.mxu0 0.0
        %392 = vmatpush2.msra.mxu0 0.0
        %393 = vmatprep.mubr.f32.mxu0 0.0
        %394 = vmatmul.mubr.f32.gmra.mxu0 %v312
        %v395 = vpop.f32.mrf.mxu0
        %v396 = vadd.f32 0.0, %v395
        %v397 = vpop.f32.mrf.mxu0
        %398 = vdwg.mxu0
        %400 = vrot.lane.b32.xlu0 %v396, 64
        %v401 = vpop.permute.xlu0 %400
        %v403 = vmax.f32 %v396, %v401
        %405 = vrot.lane.b32.xlu0 %v403, 64
        %v406 = vpop.permute.xlu0 %405
        %408 = vst.msk [vmem:[#allocation4] sm:$0xff] %vm166, %v406
        %v409 = vrot.slane %v403, 7
        %411 = vst.msk [vmem:[#allocation4] sm:$0xfe] %vm175, %v409
        %v412 = vrot.slane %v403, 1
        %414 = vst.msk [vmem:[#allocation4 + $0x8] sm:$0x7f] %vm186, %v412
        %415 = vst.msk [vmem:[#allocation4] sm:$0x1] %vm188, 0.0
        %416 = vst.msk [vmem:[#allocation4 + $0xf] sm:$0x1] %vm188, 0.0
        %v417 = vld [vmem:[#allocation4] sm:$0xff]
        %v418 = vld [vmem:[#allocation4 + $0x8] sm:$0xff]
        %v419 = vld [vmem:[#allocation7 + $0x140] sm:$0xff]
        %v420 = vld [vmem:[#allocation7 + $0x148] sm:$0xff]
        %v421 = vld [vmem:[#allocation7 + $0x150] sm:$0xff]
        %v422 = vld [vmem:[#allocation7 + $0x158] sm:$0xff]
        %v423 = vld [vmem:[#allocation7 + $0x160] sm:$0xff]
        %v424 = vld [vmem:[#allocation7 + $0x168] sm:$0xff]
        %v425 = vld [vmem:[#allocation7 + $0x170] sm:$0xff]
        %v426 = vld [vmem:[#allocation7 + $0x178] sm:$0xff]
        %v427 = vld [vmem:[#allocation7 + $0x180] sm:$0xff]
        %v428 = vld [vmem:[#allocation7 + $0x188] sm:$0xff]
        %v429 = vld [vmem:[#allocation7 + $0x190] sm:$0xff]
        %v430 = vld [vmem:[#allocation7 + $0x198] sm:$0xff]
        %v431 = vld [vmem:[#allocation7 + $0x1a0] sm:$0xff]
        %v432 = vld [vmem:[#allocation7 + $0x1a8] sm:$0xff]
        %v433 = vld [vmem:[#allocation7 + $0x1b0] sm:$0xff]
        %v434 = vld [vmem:[#allocation7 + $0x1b8] sm:$0xff]
        %v435 = vld [vmem:[#allocation7 + $0x1c0] sm:$0xff]
        %v436 = vld [vmem:[#allocation7 + $0x1c8] sm:$0xff]
        %v437 = vld [vmem:[#allocation7 + $0x1d0] sm:$0xff]
        %v438 = vld [vmem:[#allocation7 + $0x1d8] sm:$0xff]
        %v439 = vld [vmem:[#allocation7 + $0x1e0] sm:$0xff]
        %v440 = vld [vmem:[#allocation7 + $0x1e8] sm:$0xff]
        %v441 = vld [vmem:[#allocation7 + $0x1f0] sm:$0xff]
        %v442 = vld [vmem:[#allocation7 + $0x1f8] sm:$0xff]
        %v443 = vld [vmem:[#allocation7 + $0x401] sm:$0x1]
        %v444 = vlaneseq
        %v445 = vshrl.u32 %v444, 7
        %v446 = vsub.s32 0, %v445
        %v447 = vrot.slane %v443, %v446
        %v449 = vsel %vm177, %v418, 0
        %451 = vmatprep.subr.mxu0 0.0
        %452 = vmatpush1.msra.mxu0 %v434
        %453 = vmatprep.subr.mxu0 0.0
        %454 = vmatpush1.msra.mxu0 %v433
        %455 = vmatprep.subr.mxu0 0.0
        %456 = vmatpush1.msra.mxu0 %v432
        %457 = vmatprep.subr.mxu0 0.0
        %458 = vmatpush1.msra.mxu0 %v431
        %459 = vmatprep.subr.mxu0 0.0
        %460 = vmatpush1.msra.mxu0 %v430
        %461 = vmatprep.subr.mxu0 0.0
        %462 = vmatpush1.msra.mxu0 %v429
        %463 = vmatprep.subr.mxu0 0.0
        %464 = vmatpush1.msra.mxu0 %v428
        %465 = vmatprep.subr.mxu0 0.0
        %466 = vmatpush1.msra.mxu0 %v427
        %467 = vmatprep.subr.mxu0 0.0
        %468 = vmatpush1.msra.mxu0 %v426
        %469 = vmatprep.subr.mxu0 0.0
        %470 = vmatpush1.msra.mxu0 %v425
        %471 = vmatprep.subr.mxu0 0.0
        %472 = vmatpush1.msra.mxu0 %v424
        %473 = vmatprep.subr.mxu0 0.0
        %474 = vmatpush1.msra.mxu0 %v423
        %475 = vmatprep.subr.mxu0 0.0
        %476 = vmatpush1.msra.mxu0 %v422
        %477 = vmatprep.subr.mxu0 0.0
        %478 = vmatpush1.msra.mxu0 %v421
        %479 = vmatprep.subr.mxu0 0.0
        %480 = vmatpush1.msra.mxu0 %v420
        %481 = vmatprep.subr.mxu0 0.0
        %482 = vmatpush1.msra.mxu0 %v419
        %483 = vmatprep.subr.mxu0 0.0
        %484 = vmatpush2.msra.mxu0 0.0
        %485 = vmatprep.subr.mxu0 0.0
        %486 = vmatpush2.msra.mxu0 0.0
        %487 = vmatprep.subr.mxu0 0.0
        %488 = vmatpush2.msra.mxu0 0.0
        %489 = vmatprep.subr.mxu0 0.0
        %490 = vmatpush2.msra.mxu0 0.0
        %491 = vmatprep.subr.mxu0 0.0
        %492 = vmatpush2.msra.mxu0 0.0
        %493 = vmatprep.subr.mxu0 0.0
        %494 = vmatpush2.msra.mxu0 0.0
        %495 = vmatprep.subr.mxu0 0.0
        %496 = vmatpush2.msra.mxu0 0.0
        %497 = vmatprep.subr.mxu0 0.0
        %498 = vmatpush2.msra.mxu0 0.0
        %499 = vmatprep.subr.mxu0 0.0
        %500 = vmatpush2.msra.mxu0 %v442
        %501 = vmatprep.subr.mxu0 0.0
        %502 = vmatpush2.msra.mxu0 %v441
        %503 = vmatprep.subr.mxu0 0.0
        %504 = vmatpush2.msra.mxu0 %v440
        %505 = vmatprep.subr.mxu0 0.0
        %506 = vmatpush2.msra.mxu0 %v439
        %507 = vmatprep.subr.mxu0 0.0
        %508 = vmatpush2.msra.mxu0 %v438
        %509 = vmatprep.subr.mxu0 0.0
        %510 = vmatpush2.msra.mxu0 %v437
        %511 = vmatprep.subr.mxu0 0.0
        %512 = vmatpush2.msra.mxu0 %v436
        %513 = vmatprep.subr.mxu0 0.0
        %514 = vmatpush2.msra.mxu0 %v435
        %515 = vmatprep.mubr.f32.mxu0 %v449
        %516 = vmatmul.mubr.f32.gmra.mxu0 %v417
        %v517 = vpop.f32.mrf.mxu0
        %v518 = vadd.f32 %v447, %v517
        %v519 = vpop.f32.mrf.mxu0
        %520 = vdwg.mxu0
        %v521 = vmax.f32 %v518, 0.0
        %522 = vst [vmem:[#allocation5] sm:$0xff] %v521
        %v523 = vld [vmem:[#allocation5] ss:$2 sm:$0xf]
        %s524 = scalar_lea.vmem [#allocation5], 1
        %v525 = vld [vmem:[%s524] ss:$2 sm:$0xf]
        %v526 = vmax.f32 %v523, %v525
        %v527 = vld [vmem:[#allocation7 + $0x200] sm:$0xff]
        %v528 = vld [vmem:[#allocation7 + $0x208] sm:$0xff]
        %v529 = vld [vmem:[#allocation7 + $0x210] sm:$0xff]
        %v530 = vld [vmem:[#allocation7 + $0x218] sm:$0xff]
        %v531 = vld [vmem:[#allocation7 + $0x220] sm:$0xff]
        %v532 = vld [vmem:[#allocation7 + $0x228] sm:$0xff]
        %v533 = vld [vmem:[#allocation7 + $0x230] sm:$0xff]
        %v534 = vld [vmem:[#allocation7 + $0x238] sm:$0xff]
        %v535 = vld [vmem:[#allocation7 + $0x240] sm:$0xff]
        %v536 = vld [vmem:[#allocation7 + $0x248] sm:$0xff]
        %v537 = vld [vmem:[#allocation7 + $0x250] sm:$0xff]
        %v538 = vld [vmem:[#allocation7 + $0x258] sm:$0xff]
        %v539 = vld [vmem:[#allocation7 + $0x260] sm:$0xff]
        %v540 = vld [vmem:[#allocation7 + $0x268] sm:$0xff]
        %v541 = vld [vmem:[#allocation7 + $0x270] sm:$0xff]
        %v542 = vld [vmem:[#allocation7 + $0x278] sm:$0xff]
        %543 = vmatprep.subr.mxu0 0.0
        %544 = vmatpush1.msra.mxu0 %v542
        %545 = vmatprep.subr.mxu0 0.0
        %546 = vmatpush1.msra.mxu0 %v541
        %547 = vmatprep.subr.mxu0 0.0
        %548 = vmatpush1.msra.mxu0 %v540
        %549 = vmatprep.subr.mxu0 0.0
        %550 = vmatpush1.msra.mxu0 %v539
        %551 = vmatprep.subr.mxu0 0.0
        %552 = vmatpush1.msra.mxu0 %v538
        %553 = vmatprep.subr.mxu0 0.0
        %554 = vmatpush1.msra.mxu0 %v537
        %555 = vmatprep.subr.mxu0 0.0
        %556 = vmatpush1.msra.mxu0 %v536
        %557 = vmatprep.subr.mxu0 0.0
        %558 = vmatpush1.msra.mxu0 %v535
        %559 = vmatprep.subr.mxu0 0.0
        %560 = vmatpush1.msra.mxu0 %v534
        %561 = vmatprep.subr.mxu0 0.0
        %562 = vmatpush1.msra.mxu0 %v533
        %563 = vmatprep.subr.mxu0 0.0
        %564 = vmatpush1.msra.mxu0 %v532
        %565 = vmatprep.subr.mxu0 0.0
        %566 = vmatpush1.msra.mxu0 %v531
        %567 = vmatprep.subr.mxu0 0.0
        %568 = vmatpush1.msra.mxu0 %v530
        %569 = vmatprep.subr.mxu0 0.0
        %570 = vmatpush1.msra.mxu0 %v529
        %571 = vmatprep.subr.mxu0 0.0
        %572 = vmatpush1.msra.mxu0 %v528
        %573 = vmatprep.subr.mxu0 0.0
        %574 = vmatpush1.msra.mxu0 %v527
        %575 = vmatprep.subr.mxu0 0.0
        %576 = vmatpush2.msra.mxu0 0.0
        %577 = vmatprep.subr.mxu0 0.0
        %578 = vmatpush2.msra.mxu0 0.0
        %579 = vmatprep.subr.mxu0 0.0
        %580 = vmatpush2.msra.mxu0 0.0
        %581 = vmatprep.subr.mxu0 0.0
        %582 = vmatpush2.msra.mxu0 0.0
        %583 = vmatprep.subr.mxu0 0.0
        %584 = vmatpush2.msra.mxu0 0.0
        %585 = vmatprep.subr.mxu0 0.0
        %586 = vmatpush2.msra.mxu0 0.0
        %587 = vmatprep.subr.mxu0 0.0
        %588 = vmatpush2.msra.mxu0 0.0
        %589 = vmatprep.subr.mxu0 0.0
        %590 = vmatpush2.msra.mxu0 0.0
        %591 = vmatprep.subr.mxu0 0.0
        %592 = vmatpush2.msra.mxu0 0.0
        %593 = vmatprep.subr.mxu0 0.0
        %594 = vmatpush2.msra.mxu0 0.0
        %595 = vmatprep.subr.mxu0 0.0
        %596 = vmatpush2.msra.mxu0 0.0
        %597 = vmatprep.subr.mxu0 0.0
        %598 = vmatpush2.msra.mxu0 0.0
        %599 = vmatprep.subr.mxu0 0.0
        %600 = vmatpush2.msra.mxu0 0.0
        %601 = vmatprep.subr.mxu0 0.0
        %602 = vmatpush2.msra.mxu0 0.0
        %603 = vmatprep.subr.mxu0 0.0
        %604 = vmatpush2.msra.mxu0 0.0
        %605 = vmatprep.subr.mxu0 0.0
        %606 = vmatpush2.msra.mxu0 0.0
        %607 = vmatprep.mubr.f32.mxu0 0.0
        %608 = vmatmul.mubr.f32.gmra.mxu0 %v526
        %v609 = vpop.f32.mrf.mxu0
        %v610 = vadd.f32 0.0, %v609
        %v611 = vpop.f32.mrf.mxu0
        %612 = vdwg.mxu0
        %614 = vrot.lane.b32.xlu0 %v610, 64
        %v615 = vpop.permute.xlu0 %614
        %v617 = vmax.f32 %v610, %v615
        %v618 = vlaneseq
        %vm619 = vcmp.ge.s32.totalorder %v618, 0
        %vm620 = vcmp.lt.s32.totalorder %v618, 64
        %vm621 = vmand %vm619, %vm620
        %622 = vst.msk [vmem:[#allocation6] sm:$0x1] %vm621, %v617
        %v625 = vunpack.c.l.s4 1966171168
        %v626 = vunpack.c.0.s8 %v625
        %v627 = vlaneseq
        %v628 = vshrl.u32 %v627, 7
        %v629 = vsub.s32 %v626, %v628
        %v630 = vrot.slane %v617, %v629
        %v631 = vcombine.high %v630, %v630
        %v633 = vunpack.c.l.s4 1966171168
        %v634 = vunpack.c.0.s8 %v633
        %v635 = vlaneseq
        %v636 = vshrl.u32 %v635, 7
        %v637 = vsub.s32 %v634, %v636
        %v638 = vrot.slane %v630, %v637
        %v640 = vunpack.c.l.s4 1966171168
        %v641 = vunpack.c.0.s8 %v640
        %v642 = vlaneseq
        %v643 = vshrl.u32 %v642, 7
        %v644 = vsub.s32 %v641, %v643
        %v645 = vrot.slane %v631, %v644
        %646 = vrot.lane.b32.xlu0 %v645, 64
        %v647 = vpop.permute.xlu0 %646
        %vm649 = vcmp.ge.s32.totalorder %v618, 64
        %vm650 = vcmp.lt.s32.totalorder %v618, 128
        %vm651 = vmand %vm649, %vm650
        %652 = vst.msk [vmem:[#allocation6] sm:$0x1] %vm651, %v647
        %v653 = vcombine.high %v638, %v638
        %655 = vst.msk [vmem:[#allocation6 + $0x1] sm:$0x1] %vm621, %v653
        %v656 = vcombine.high %v645, %v645
        %657 = vrot.lane.b32.xlu0 %v656, 64
        %v658 = vpop.permute.xlu0 %657
        %660 = vst.msk [vmem:[#allocation6 + $0x1] sm:$0x1] %vm651, %v658
        %v661 = vld [vmem:[#allocation6] sm:$0x3]
        %v662 = vld [vmem:[#allocation7 + $0x280] sm:$0xff]
        %v663 = vld [vmem:[#allocation7 + $0x288] sm:$0xff]
        %v664 = vld [vmem:[#allocation7 + $0x290] sm:$0xff]
        %v665 = vld [vmem:[#allocation7 + $0x298] sm:$0xff]
        %v666 = vld [vmem:[#allocation7 + $0x2a0] sm:$0xff]
        %v667 = vld [vmem:[#allocation7 + $0x2a8] sm:$0xff]
        %v668 = vld [vmem:[#allocation7 + $0x2b0] sm:$0xff]
        %v669 = vld [vmem:[#allocation7 + $0x2b8] sm:$0xff]
        %v670 = vld [vmem:[#allocation7 + $0x2c0] sm:$0xff]
        %v671 = vld [vmem:[#allocation7 + $0x2c8] sm:$0xff]
        %v672 = vld [vmem:[#allocation7 + $0x2d0] sm:$0xff]
        %v673 = vld [vmem:[#allocation7 + $0x2d8] sm:$0xff]
        %v674 = vld [vmem:[#allocation7 + $0x2e0] sm:$0xff]
        %v675 = vld [vmem:[#allocation7 + $0x2e8] sm:$0xff]
        %v676 = vld [vmem:[#allocation7 + $0x2f0] sm:$0xff]
        %v677 = vld [vmem:[#allocation7 + $0x2f8] sm:$0xff]
        %v678 = vld [vmem:[#allocation7 + $0x300] sm:$0xff]
        %v679 = vld [vmem:[#allocation7 + $0x308] sm:$0xff]
        %v680 = vld [vmem:[#allocation7 + $0x310] sm:$0xff]
        %v681 = vld [vmem:[#allocation7 + $0x318] sm:$0xff]
        %v682 = vld [vmem:[#allocation7 + $0x320] sm:$0xff]
        %v683 = vld [vmem:[#allocation7 + $0x328] sm:$0xff]
        %v684 = vld [vmem:[#allocation7 + $0x330] sm:$0xff]
        %v685 = vld [vmem:[#allocation7 + $0x338] sm:$0xff]
        %v686 = vld [vmem:[#allocation7 + $0x340] sm:$0xff]
        %v687 = vld [vmem:[#allocation7 + $0x348] sm:$0xff]
        %v688 = vld [vmem:[#allocation7 + $0x350] sm:$0xff]
        %v689 = vld [vmem:[#allocation7 + $0x358] sm:$0xff]
        %v690 = vld [vmem:[#allocation7 + $0x360] sm:$0xff]
        %v691 = vld [vmem:[#allocation7 + $0x368] sm:$0xff]
        %v692 = vld [vmem:[#allocation7 + $0x370] sm:$0xff]
        %v693 = vld [vmem:[#allocation7 + $0x378] sm:$0xff]
        %v694 = vld [vmem:[#allocation7 + $0x402] sm:$0x1]
        %v696 = vlaneseq
        %v697 = vshrl.u32 %v696, 7
        %v698 = vsub.s32 0, %v697
        %v699 = vrot.slane %v661, %v698
        %v700 = vlaneseq
        %v701 = vshrl.u32 %v700, 7
        %v702 = vsub.s32 1, %v701
        %v703 = vrot.slane %v661, %v702
        %706 = vmatprep.subr.mxu0 0.0
        %707 = vmatpush1.msra.mxu0 %v677
        %708 = vmatprep.subr.mxu0 0.0
        %709 = vmatpush1.msra.mxu0 %v676
        %710 = vmatprep.subr.mxu0 0.0
        %711 = vmatpush1.msra.mxu0 %v675
        %712 = vmatprep.subr.mxu0 0.0
        %713 = vmatpush1.msra.mxu0 %v674
        %714 = vmatprep.subr.mxu0 0.0
        %715 = vmatpush1.msra.mxu0 %v673
        %716 = vmatprep.subr.mxu0 0.0
        %717 = vmatpush1.msra.mxu0 %v672
        %718 = vmatprep.subr.mxu0 0.0
        %719 = vmatpush1.msra.mxu0 %v671
        %720 = vmatprep.subr.mxu0 0.0
        %721 = vmatpush1.msra.mxu0 %v670
        %722 = vmatprep.subr.mxu0 0.0
        %723 = vmatpush1.msra.mxu0 %v669
        %724 = vmatprep.subr.mxu0 0.0
        %725 = vmatpush1.msra.mxu0 %v668
        %726 = vmatprep.subr.mxu0 0.0
        %727 = vmatpush1.msra.mxu0 %v667
        %728 = vmatprep.subr.mxu0 0.0
        %729 = vmatpush1.msra.mxu0 %v666
        %730 = vmatprep.subr.mxu0 0.0
        %731 = vmatpush1.msra.mxu0 %v665
        %732 = vmatprep.subr.mxu0 0.0
        %733 = vmatpush1.msra.mxu0 %v664
        %734 = vmatprep.subr.mxu0 0.0
        %735 = vmatpush1.msra.mxu0 %v663
        %736 = vmatprep.subr.mxu0 0.0
        %737 = vmatpush1.msra.mxu0 %v662
        %738 = vmatprep.subr.mxu0 0.0
        %739 = vmatpush2.msra.mxu0 %v693
        %740 = vmatprep.subr.mxu0 0.0
        %741 = vmatpush2.msra.mxu0 %v692
        %742 = vmatprep.subr.mxu0 0.0
        %743 = vmatpush2.msra.mxu0 %v691
        %744 = vmatprep.subr.mxu0 0.0
        %745 = vmatpush2.msra.mxu0 %v690
        %746 = vmatprep.subr.mxu0 0.0
        %747 = vmatpush2.msra.mxu0 %v689
        %748 = vmatprep.subr.mxu0 0.0
        %749 = vmatpush2.msra.mxu0 %v688
        %750 = vmatprep.subr.mxu0 0.0
        %751 = vmatpush2.msra.mxu0 %v687
        %752 = vmatprep.subr.mxu0 0.0
        %753 = vmatpush2.msra.mxu0 %v686
        %754 = vmatprep.subr.mxu0 0.0
        %755 = vmatpush2.msra.mxu0 %v685
        %756 = vmatprep.subr.mxu0 0.0
        %757 = vmatpush2.msra.mxu0 %v684
        %758 = vmatprep.subr.mxu0 0.0
        %759 = vmatpush2.msra.mxu0 %v683
        %760 = vmatprep.subr.mxu0 0.0
        %761 = vmatpush2.msra.mxu0 %v682
        %762 = vmatprep.subr.mxu0 0.0
        %763 = vmatpush2.msra.mxu0 %v681
        %764 = vmatprep.subr.mxu0 0.0
        %765 = vmatpush2.msra.mxu0 %v680
        %766 = vmatprep.subr.mxu0 0.0
        %767 = vmatpush2.msra.mxu0 %v679
        %768 = vmatprep.subr.mxu0 0.0
        %769 = vmatpush2.msra.mxu0 %v678
        %770 = vmatprep.mubr.f32.mxu0 %v703
        %771 = vmatmul.mubr.f32.gmra.mxu0 %v699
        %v772 = vpop.f32.mrf.mxu0
        %v773 = vadd.f32 %v694, %v772
        %v774 = vpop.f32.mrf.mxu0
        %775 = vdwg.mxu0
        %v776 = vmax.f32 %v773, 0.0
        %v777 = vld [vmem:[#allocation7 + $0x380] sm:$0xff]
        %v778 = vld [vmem:[#allocation7 + $0x388] sm:$0xff]
        %v779 = vld [vmem:[#allocation7 + $0x390] sm:$0xff]
        %v780 = vld [vmem:[#allocation7 + $0x398] sm:$0xff]
        %v781 = vld [vmem:[#allocation7 + $0x3a0] sm:$0xff]
        %v782 = vld [vmem:[#allocation7 + $0x3a8] sm:$0xff]
        %v783 = vld [vmem:[#allocation7 + $0x3b0] sm:$0xff]
        %v784 = vld [vmem:[#allocation7 + $0x3b8] sm:$0xff]
        %v785 = vld [vmem:[#allocation7 + $0x3c0] sm:$0xff]
        %v786 = vld [vmem:[#allocation7 + $0x3c8] sm:$0xff]
        %v787 = vld [vmem:[#allocation7 + $0x3d0] sm:$0xff]
        %v788 = vld [vmem:[#allocation7 + $0x3d8] sm:$0xff]
        %v789 = vld [vmem:[#allocation7 + $0x3e0] sm:$0xff]
        %v790 = vld [vmem:[#allocation7 + $0x3e8] sm:$0xff]
        %v791 = vld [vmem:[#allocation7 + $0x3f0] sm:$0xff]
        %v792 = vld [vmem:[#allocation7 + $0x3f8] sm:$0xff]
        %v793 = vld [vmem:[#allocation7 + $0x403] sm:$0x1]
        %794 = vmatprep.subr.mxu0 0.0
        %795 = vmatpush1.msra.mxu0 %v792
        %796 = vmatprep.subr.mxu0 0.0
        %797 = vmatpush1.msra.mxu0 %v791
        %798 = vmatprep.subr.mxu0 0.0
        %799 = vmatpush1.msra.mxu0 %v790
        %800 = vmatprep.subr.mxu0 0.0
        %801 = vmatpush1.msra.mxu0 %v789
        %802 = vmatprep.subr.mxu0 0.0
        %803 = vmatpush1.msra.mxu0 %v788
        %804 = vmatprep.subr.mxu0 0.0
        %805 = vmatpush1.msra.mxu0 %v787
        %806 = vmatprep.subr.mxu0 0.0
        %807 = vmatpush1.msra.mxu0 %v786
        %808 = vmatprep.subr.mxu0 0.0
        %809 = vmatpush1.msra.mxu0 %v785
        %810 = vmatprep.subr.mxu0 0.0
        %811 = vmatpush1.msra.mxu0 %v784
        %812 = vmatprep.subr.mxu0 0.0
        %813 = vmatpush1.msra.mxu0 %v783
        %814 = vmatprep.subr.mxu0 0.0
        %815 = vmatpush1.msra.mxu0 %v782
        %816 = vmatprep.subr.mxu0 0.0
        %817 = vmatpush1.msra.mxu0 %v781
        %818 = vmatprep.subr.mxu0 0.0
        %819 = vmatpush1.msra.mxu0 %v780
        %820 = vmatprep.subr.mxu0 0.0
        %821 = vmatpush1.msra.mxu0 %v779
        %822 = vmatprep.subr.mxu0 0.0
        %823 = vmatpush1.msra.mxu0 %v778
        %824 = vmatprep.subr.mxu0 0.0
        %825 = vmatpush1.msra.mxu0 %v777
        %826 = vmatprep.subr.mxu0 0.0
        %827 = vmatpush2.msra.mxu0 0.0
        %828 = vmatprep.subr.mxu0 0.0
        %829 = vmatpush2.msra.mxu0 0.0
        %830 = vmatprep.subr.mxu0 0.0
        %831 = vmatpush2.msra.mxu0 0.0
        %832 = vmatprep.subr.mxu0 0.0
        %833 = vmatpush2.msra.mxu0 0.0
        %834 = vmatprep.subr.mxu0 0.0
        %835 = vmatpush2.msra.mxu0 0.0
        %836 = vmatprep.subr.mxu0 0.0
        %837 = vmatpush2.msra.mxu0 0.0
        %838 = vmatprep.subr.mxu0 0.0
        %839 = vmatpush2.msra.mxu0 0.0
        %840 = vmatprep.subr.mxu0 0.0
        %841 = vmatpush2.msra.mxu0 0.0
        %842 = vmatprep.subr.mxu0 0.0
        %843 = vmatpush2.msra.mxu0 0.0
        %844 = vmatprep.subr.mxu0 0.0
        %845 = vmatpush2.msra.mxu0 0.0
        %846 = vmatprep.subr.mxu0 0.0
        %847 = vmatpush2.msra.mxu0 0.0
        %848 = vmatprep.subr.mxu0 0.0
        %849 = vmatpush2.msra.mxu0 0.0
        %850 = vmatprep.subr.mxu0 0.0
        %851 = vmatpush2.msra.mxu0 0.0
        %852 = vmatprep.subr.mxu0 0.0
        %853 = vmatpush2.msra.mxu0 0.0
        %854 = vmatprep.subr.mxu0 0.0
        %855 = vmatpush2.msra.mxu0 0.0
        %856 = vmatprep.subr.mxu0 0.0
        %857 = vmatpush2.msra.mxu0 0.0
        %858 = vmatprep.mubr.f32.mxu0 0.0
        %859 = vmatmul.mubr.f32.gmra.mxu0 %v776
        %v860 = vpop.f32.mrf.mxu0
        %v861 = vadd.f32 %v793, %v860
        %v862 = vpop.f32.mrf.mxu0
        %863 = vdwg.mxu0
        %864 = vst [vmem:[%s150] sm:$0x1] %v861
        %s865 = sand.u32 %s72, 1
        %s866 = scalar_lea.sflag [#allocation9], %s865
        %s867 = sand.u32 %s72, 1
        %s868 = scalar_lea.vmem [#allocation10], %s867
        // Predicated region
        $region33: #{forward.1} parent=27 // pred_check
          %p869 = pneg %p82
        $region34: #{forward.1} parent=27 // pred_check_branch
          %871 = sbr.rel (%p869) target = $region36
        $region35: #{forward.1} parent=27 // pred_region
          %s873 = ssub.s32 16, 16
          %874 = vsyncadd %s866, %s873
          %s875 = smul.addr %s17, 16
          %s876 = scalar_lea.hbm %s2, %s875
          %s878 = sshll.u32 %s868, 4
          %s879 = int_to_ptr.vmem [resolvable:$true] %s878
          %881 = dma.vmem_to_hbm [thread:$0]  %s879, 16, %s876, %s866
        $region36: #{forward.1} parent=27 // pred_fallthru
          _
      $region28: #{forward.1} parent=5 // pred_fallthru
        _
      %p882 = scmp.le.s32.totalorder 2, %s12
      // Predicated region
      $region37: #{forward.1} parent=5 // pred_check
        %p883 = pneg %p882
      $region38: #{forward.1} parent=5 // pred_check_branch
        %885 = sbr.rel (%p883) target = $region40
      $region39: #{forward.1} parent=5 // pred_region
        %s886 = ssub.s32 %s12, 2
        // Predicated region
        $region41: #{forward.1} parent=39 // pred_check
          %p887 = pneg %p88
        $region42: #{forward.1} parent=39 // pred_check_branch
          %889 = sbr.rel (%p887) target = $region44
        $region43: #{forward.1} parent=39 // pred_region
          %s890 = sand.u32 %s73, 1
          %s891 = scalar_lea.sflag [#allocation9], %s890
          %s892 = sand.u32 %s73, 1
          %s893 = scalar_lea.vmem [#allocation10], %s892
          %894 = dma.done %s891, 16
        $region44: #{forward.1} parent=39 // pred_fallthru
          _
      $region40: #{forward.1} parent=5 // pred_fallthru
        _
    $region6: #{forward.1} parent=1 // loop_footer
      %s16 = sadd.s32 1, %s12
    $region7: #{forward.1} parent=1 // loop_footer_branch
      %11 = sbr.rel target = $region3
    $region8: #{forward.1} parent=1 // loop_exit
      _
    %895 = vsyncpa [#allocation8], 1
    %s896 = scalar_lea.sflag [#allocation8], 1
    %897 = vsyncpa %s896, 1
    %898 = vsyncpa [#allocation9], 1
    %s899 = scalar_lea.sflag [#allocation9], 1
    %900 = vsyncpa %s899, 1

</llo_original>
